<compile_context>
chip_gen: v6e
topology: v6e:2x2x1
jax: 0.10.0
libtpu: 0.0.40
codegen_flags: <defaults>
</compile_context>

<pallas_src>
import functools

import jax
import jax.numpy as jnp
from jax.experimental import pallas as pl
from jax.experimental.pallas import tpu as pltpu

_VMEM_LIMIT = 32 * 1024 * 1024  # safe on v5e/v6e (128M) and v7x (64M physical)


def _round_up(v, m):
    return (v + m - 1) // m * m


# --------------------------------------------------------------------------- #
# Pallas kernels
# --------------------------------------------------------------------------- #
def _matmul_bias_kernel(a_ref, b_ref, bias_ref, o_ref):
    o_ref[...] = (
        jnp.dot(a_ref[...], b_ref[...], preferred_element_type=jnp.float32)
        + bias_ref[...]
    )


def pallas_matmul(a, b, bias=None):
    """(M, K) @ (K, N) + bias -> fp32.

    bf16 MXU matmul with fp32 accumulation.  Rows tiled by 512 (128 for small
    M), N padded to a lane-dense multiple of 128.  M < 128 falls back to XLA
    (pallas_call launch overhead would dominate).
    """
    M, K = a.shape
    N = b.shape[1]
    if bias is None:
        bias = jnp.zeros((N,), jnp.float32)
    bias = bias.astype(jnp.float32)
    if M < 128:
        return jnp.dot(a.astype(jnp.float32), b.astype(jnp.float32)) + bias

    a16 = a.astype(jnp.bfloat16)
    b16 = b.astype(jnp.bfloat16)
    Np = _round_up(N, 128)
    if Np != N:
        b16 = jnp.pad(b16, ((0, 0), (0, Np - N)))
        bias = jnp.pad(bias, (0, Np - N))
    TM = 512 if M >= 512 else 128
    Mp = _round_up(M, TM)
    if Mp != M:
        a16 = jnp.pad(a16, ((0, Mp - M), (0, 0)))
    bias2 = bias.reshape(1, Np)

    out = pl.pallas_call(
        _matmul_bias_kernel,
        out_shape=jax.ShapeDtypeStruct((Mp, Np), jnp.float32),
        grid=(Mp // TM,),
        in_specs=[
            pl.BlockSpec((TM, K), lambda i: (i, 0)),
            pl.BlockSpec((K, Np), lambda i: (0, 0)),
            pl.BlockSpec((1, Np), lambda i: (0, 0)),
        ],
        out_specs=pl.BlockSpec((TM, Np), lambda i: (i, 0)),
        compiler_params=pltpu.CompilerParams(
            dimension_semantics=("parallel",),
            vmem_limit_bytes=_VMEM_LIMIT),
    )(a16, b16, bias2)
    return out[:M, :N]


def _direct_conv_kernel(KH, KW, TH, Wo, Cin, Cp, relu, scale, has_res, *refs):
    """Direct stride-1 conv: one (batch, output-row-strip) tile per grid step.

    The whole padded image for this batch element is resident in VMEM
    (x_ref, constant block index across the strip axis); the strip selects
    its KH halo row-slabs with a dynamic pl.ds offset and accumulates
    KH*KW shifted 1x1 matmuls in fp32 (bf16 operands on the MXU).
    Optional fused epilogue: ReLU, scalar scale, residual add.
    """
    if has_res:
        x_ref, w_ref, b_ref, r_ref, o_ref = refs
    else:
        x_ref, w_ref, b_ref, o_ref = refs
        r_ref = None
    M = TH * Wo
    row0 = pl.program_id(1) * TH
    acc = jnp.zeros((M, Cp), jnp.float32) + b_ref[...]
    for kh in range(KH):
        slab = x_ref[0, pl.ds(row0 + kh, TH), :, :]          # (TH, Wp, Cin)
        for kw in range(KW):
            xs = slab[:, kw:kw + Wo, :].reshape(M, Cin)
            acc = acc + jnp.dot(xs, w_ref[kh * KW + kw],
                                preferred_element_type=jnp.float32)
    if relu:
        acc = jnp.maximum(acc, 0.0)
    if scale is not None:
        acc = acc * scale
    if r_ref is not None:
        acc = acc + r_ref[0].reshape(M, Cp)
    o_ref[0] = acc


def conv2d_stride1_pallas(x, w, b, pads, relu=False, scale=None, res=None):
    """Stride-1 NHWC conv via the direct tap-accumulated Pallas kernel.

    x: (N, H, W, Cin) ; w: (Cout, Cin, KH, KW) ; pads = (top, bottom, left, right)
    res (optional): (N, Ho, Wo, Cout) fp32 residual added after scale.
    Returns (N, Ho, Wo, Cout) fp32.  Output channels padded to 128 lanes
    inside the kernel (lane-dense stores) and sliced afterwards.
    """
    N, H, W, Cin = x.shape
    Cout, _, KH, KW = w.shape
    pt, pb, plf, prt = pads
    Ho = H + pt + pb - KH + 1
    Wo = W + plf + prt - KW + 1
    Hp = H + pt + pb
    Wp = W + plf + prt

    xp = jnp.pad(x.astype(jnp.bfloat16),
                 ((0, 0), (pt, pb), (plf, prt), (0, 0)))

    Cp = _round_up(Cout, 128)
    wt = jnp.transpose(w, (2, 3, 1, 0)).reshape(KH * KW, Cin, Cout)
    wt = jnp.pad(wt, ((0, 0), (0, 0), (0, Cp - Cout))).astype(jnp.bfloat16)
    if b is None:
        b = jnp.zeros((Cout,), jnp.float32)
    bias = jnp.pad(b.astype(jnp.float32), (0, Cp - Cout)).reshape(1, Cp)

    # output-row strip: ~1024 matmul rows per grid step, must divide Ho
    TH = min(Ho, max(1, 1024 // Wo))
    while Ho % TH:
        TH -= 1

    in_specs = [
        pl.BlockSpec((1, Hp, Wp, Cin), lambda n, h: (n, 0, 0, 0)),  # resident
        pl.BlockSpec((KH * KW, Cin, Cp), lambda n, h: (0, 0, 0)),
        pl.BlockSpec((1, Cp), lambda n, h: (0, 0)),
    ]
    args = [xp, wt, bias]
    has_res = res is not None
    if has_res:
        assert Cout == Cp and res.shape == (N, Ho, Wo, Cout)
        in_specs.append(pl.BlockSpec((1, TH, Wo, Cout), lambda n, h: (n, h, 0, 0)))
        args.append(res.astype(jnp.float32))

    kern = functools.partial(_direct_conv_kernel, KH, KW, TH, Wo, Cin, Cp,
                             relu, scale, has_res)
    out = pl.pallas_call(
        kern,
        out_shape=jax.ShapeDtypeStruct((N, Ho * Wo, Cp), jnp.float32),
        grid=(N, Ho // TH),
        in_specs=in_specs,
        out_specs=pl.BlockSpec((1, TH * Wo, Cp), lambda n, h: (n, h, 0)),
        compiler_params=pltpu.CompilerParams(
            dimension_semantics=("parallel", "arbitrary"),
            vmem_limit_bytes=_VMEM_LIMIT),
    )(*args)
    return out[:, :, :Cout].reshape(N, Ho, Wo, Cout)


def _cross_attn_kernel(q_ref, k_ref, v_ref, o_ref):
    # q: (L, Cq), k: (L, Cq), v: (L, C) all bf16, row-major over spatial index.
    q = q_ref[0]
    k = k_ref[0]
    v = v_ref[0]
    # attn[i, j] = sum_c q[i, c] * k[j, c]   (contract last axes, no transpose)
    a = jax.lax.dot_general(q, k, (((1,), (1,)), ((), ())),
                            preferred_element_type=jnp.float32)
    a = a - jnp.max(a, axis=-1, keepdims=True)
    e = jnp.exp(a)
    p = e * pl.reciprocal(jnp.sum(e, axis=-1, keepdims=True), approx=True)
    # out[i, c] = sum_j p[i, j] * v[j, c]
    o_ref[0] = jnp.dot(p.astype(jnp.bfloat16), v,
                       preferred_element_type=jnp.float32)


def pallas_cross_attention(q, k, v):
    """q: (B, L, Cq), k: (B, L, Ck), v: (B, L, C)  ->  (B, L, C) fp32."""
    B, L, Cq = q.shape
    Ck = k.shape[-1]
    C = v.shape[-1]
    return pl.pallas_call(
        _cross_attn_kernel,
        out_shape=jax.ShapeDtypeStruct((B, L, C), jnp.float32),
        grid=(B,),
        in_specs=[
            pl.BlockSpec((1, L, Cq), lambda b: (b, 0, 0)),
            pl.BlockSpec((1, L, Ck), lambda b: (b, 0, 0)),
            pl.BlockSpec((1, L, C), lambda b: (b, 0, 0)),
        ],
        out_specs=pl.BlockSpec((1, L, C), lambda b: (b, 0, 0)),
        compiler_params=pltpu.CompilerParams(
            dimension_semantics=("parallel",),
            vmem_limit_bytes=_VMEM_LIMIT),
    )(q.astype(jnp.bfloat16), k.astype(jnp.bfloat16), v.astype(jnp.bfloat16))


# --------------------------------------------------------------------------- #
# Layer helpers
# --------------------------------------------------------------------------- #
def conv2d(x, w, b=None, padding=0, relu=False):
    """Stride-1 NCHW conv.  1x1 -> row-tiled Pallas matmul; KxK -> direct
    Pallas conv; tiny shapes (and <128-multiple-channel inputs) -> XLA im2col."""
    N, C, H, W = x.shape
    Cout, Cin, KH, KW = w.shape
    if KH == 1 and KW == 1 and padding == 0:
        rows = x.transpose(0, 2, 3, 1).reshape(N * H * W, C)
        y = pallas_matmul(rows, w.reshape(Cout, Cin).T, b)
        if relu:
            y = jnp.maximum(y, 0.0)
        return y.reshape(N, H, W, Cout).transpose(0, 3, 1, 2)

    Ho = H + 2 * padding - KH + 1
    Wo = W + 2 * padding - KW + 1
    if N * Ho * Wo >= 128 and Cin % 128 == 0:
        y = conv2d_stride1_pallas(x.transpose(0, 2, 3, 1), w, b,
                                  (padding, padding, padding, padding),
                                  relu=relu)
        return y.transpose(0, 3, 1, 2)

    # tiny conv: XLA im2col fallback (pred heads at 2x2/4x4, 2-channel convs)
    xp = jnp.pad(x, ((0, 0), (0, 0), (padding, padding), (padding, padding)))
    patches = []
    for kh in range(KH):
        for kw in range(KW):
            patches.append(xp[:, :, kh:kh + Ho, kw:kw + Wo])
    p = jnp.stack(patches, axis=2).reshape(N, C * KH * KW, Ho, Wo)
    cols = p.transpose(0, 2, 3, 1).reshape(N * Ho * Wo, C * KH * KW)
    wmat = w.reshape(Cout, C * KH * KW).T
    bb = jnp.zeros((Cout,), jnp.float32) if b is None else b.astype(jnp.float32)
    y = jnp.dot(cols, wmat) + bb
    if relu:
        y = jnp.maximum(y, 0.0)
    return y.reshape(N, Ho, Wo, Cout).transpose(0, 3, 1, 2)


# ConvTranspose2d(k=4, s=2, p=1): kernel-tap selection per output parity.
_DECONV_SEL = [[3, 1], [2, 0]]


def conv_transpose2d_nhwc(x, w, b):
    """nn.ConvTranspose2d(C, C, kernel_size=4, stride=2, padding=1), NHWC in/out,
    via 4 sub-pixel stride-1 2x2 convolutions (4x fewer FLOPs than zero-dilation)."""
    N, H, W, _ = x.shape
    Cout = w.shape[1]
    outs = []
    for py in range(2):
        for px in range(2):
            wsub = w[:, :, _DECONV_SEL[py], :][:, :, :, _DECONV_SEL[px]]
            wsub = jnp.transpose(wsub, (1, 0, 2, 3))  # (Cout, Cin, 2, 2)
            pads = (((1, 0) if py == 0 else (0, 1))
                    + ((1, 0) if px == 0 else (0, 1)))
            outs.append(conv2d_stride1_pallas(x, wsub, b, pads))  # (N,H,W,Cout)
    o = jnp.stack(outs, axis=0).reshape(2, 2, N, H, W, Cout)
    return o.transpose(2, 3, 0, 4, 1, 5).reshape(N, 2 * H, 2 * W, Cout)


def residual_block_nhwc(p, x):
    out = conv2d_stride1_pallas(x, p["c1_w"], p["c1_b"], (1, 1, 1, 1), relu=True)
    # conv2 * 0.1 + x, fused in-kernel (scale + residual epilogue)
    return conv2d_stride1_pallas(out, p["c2_w"], p["c2_b"], (1, 1, 1, 1),
                                 scale=0.1, res=x)


def batchnorm2d(x, gamma, beta, mean, var, eps=1e-5):
    inv = gamma / jnp.sqrt(var + eps)
    return (x - mean[None, :, None, None]) * inv[None, :, None, None] \
        + beta[None, :, None, None]


def resize_bilinear(x, size):
    # F.interpolate(..., mode='bilinear', align_corners=False)
    N, C = x.shape[:2]
    return jax.image.resize(x, (N, C, size[0], size[1]), method="bilinear")


# --------------------------------------------------------------------------- #
# Module forwards
# --------------------------------------------------------------------------- #
def cross_att_forward(p, x1, x2):
    N, C, H, W = x1.shape
    L = H * W
    c8, c4 = C // 8, C // 4

    # Fused q/k/v 1x1 projections: one matmul per input stream.
    x1r = x1.transpose(0, 2, 3, 1).reshape(N * L, C)
    x2r = x2.transpose(0, 2, 3, 1).reshape(N * L, C)
    w1 = jnp.concatenate([p["q1_w"].reshape(c8, C), p["k1_w"].reshape(c4, C),
                          p["v1_w"].reshape(C, C)], axis=0).T
    b1 = jnp.concatenate([p["q1_b"], p["k1_b"], p["v1_b"]])
    w2 = jnp.concatenate([p["q2_w"].reshape(c8, C), p["k2_w"].reshape(c4, C),
                          p["v2_w"].reshape(C, C)], axis=0).T
    b2 = jnp.concatenate([p["q2_b"], p["k2_b"], p["v2_b"]])
    qkv1 = pallas_matmul(x1r, w1, b1).reshape(N, L, c8 + c4 + C)
    qkv2 = pallas_matmul(x2r, w2, b2).reshape(N, L, c8 + c4 + C)

    q = jnp.concatenate([qkv1[..., :c8], qkv2[..., :c8]], axis=-1)  # (N, L, C//4)
    k1 = qkv1[..., c8:c8 + c4]
    v1 = qkv1[..., c8 + c4:]
    k2 = qkv2[..., c8:c8 + c4]
    v2 = qkv2[..., c8 + c4:]

    out1 = pallas_cross_attention(q, k1, v1)            # (N, L, C)
    out2 = pallas_cross_attention(q, k2, v2)
    out1 = out1.reshape(N, H, W, C).transpose(0, 3, 1, 2)
    out2 = out2.reshape(N, H, W, C).transpose(0, 3, 1, 2)
    return p["gamma"][0] * out1 + x1, p["gamma"][0] * out2 + x2


def mlp_forward(p, x):
    # x.flatten(2).transpose(1,2) -> Linear -> permute(0,2,1).reshape(N,E,H,W)
    N, C, H, W = x.shape
    rows = x.transpose(0, 2, 3, 1).reshape(N * H * W, C)
    y = pallas_matmul(rows, p["w"].T, p["b"])
    E = p["w"].shape[0]
    return y.reshape(N, H, W, E).transpose(0, 3, 1, 2)


def make_pred_forward(p, x):
    x = conv2d(x, p["c1_w"], p["c1_b"], padding=1, relu=True)   # Conv + ReLU fused
    x = batchnorm2d(x, p["bn_w"], p["bn_b"], p["bn_m"], p["bn_v"])
    x = conv2d(x, p["c2_w"], p["c2_b"], padding=1)
    return x


def ceff_forward(p, feats):
    # TODO(synk): class CEFF is not defined in the source file; implemented here
    # as the SKFF-style selective fusion (sum -> GAP -> 1x1 reduce + LeakyReLU(0.2)
    # -> per-branch 1x1 -> softmax over branches -> weighted sum) used by the
    # reference change-detection codebases for CEFF(in_channels, height=2).
    inp = jnp.stack(feats, axis=1)                    # (N, 2, C, H, W)
    U = jnp.sum(inp, axis=1)                          # (N, C, H, W)
    S = jnp.mean(U, axis=(2, 3), keepdims=True)       # (N, C, 1, 1)
    Z = conv2d(S, p["du_w"], None)
    Z = jnp.where(Z > 0, Z, 0.2 * Z)
    a0 = conv2d(Z, p["fc0_w"], None)
    a1 = conv2d(Z, p["fc1_w"], None)
    att = jax.nn.softmax(jnp.stack([a0, a1], axis=1), axis=1)
    return jnp.sum(inp * att, axis=1)


def decoder_transformer_forward(P, x_1, x_2):
    c1_1, c2_1, c3_1, c4_1 = x_1
    c1_2, c2_2, c3_2, c4_2 = x_2

    c1_1, c1_2 = cross_att_forward(P["cross"][0], c1_1, c1_2)
    c2_1, c2_2 = cross_att_forward(P["cross"][1], c2_1, c2_2)
    c3_1, c3_2 = cross_att_forward(P["cross"][2], c3_1, c3_2)
    c4_1, c4_2 = cross_att_forward(P["cross"][3], c4_1, c4_2)

    outputs = []
    tgt_hw = c1_2.shape[2:]

    _c4_1 = mlp_forward(P["mlp"][3], c4_1)
    _c4_2 = mlp_forward(P["mlp"][3], c4_2)
    _c4 = ceff_forward(P["ceff"][0], [_c4_1, _c4_2])
    outputs.append(make_pred_forward(P["pred"][3], _c4))
    _c4_up = resize_bilinear(_c4, tgt_hw)

    _c3_1 = mlp_forward(P["mlp"][2], c3_1)
    _c3_2 = mlp_forward(P["mlp"][2], c3_2)
    _c3 = ceff_forward(P["ceff"][1], [_c3_1, _c3_2])
    outputs.append(make_pred_forward(P["pred"][2], _c3))
    _c3_up = resize_bilinear(_c3, tgt_hw)

    _c2_1 = mlp_forward(P["mlp"][1], c2_1)
    _c2_2 = mlp_forward(P["mlp"][1], c2_2)
    _c2 = ceff_forward(P["ceff"][2], [_c2_1, _c2_2])
    outputs.append(make_pred_forward(P["pred"][1], _c2))
    _c2_up = resize_bilinear(_c2, tgt_hw)

    _c1_1 = mlp_forward(P["mlp"][0], c1_1)
    _c1_2 = mlp_forward(P["mlp"][0], c1_2)
    _c1 = ceff_forward(P["ceff"][3], [_c1_1, _c1_2])
    outputs.append(make_pred_forward(P["pred"][0], _c1))

    # ----- decoder tail: NHWC throughout, one transpose in / one out -------- #
    fused_in = jnp.concatenate([_c4_up, _c3_up, _c2_up, _c1], axis=1)  # NCHW
    N, C4, Hh, Ww = fused_in.shape
    rows = fused_in.transpose(0, 2, 3, 1).reshape(N * Hh * Ww, C4)
    E = P["fuse"]["w"].shape[0]
    # fold inference-mode BatchNorm into the 1x1 linear_fuse conv
    inv = P["fuse"]["bn_w"] * jax.lax.rsqrt(P["fuse"]["bn_v"] + 1e-5)
    wf = P["fuse"]["w"].reshape(E, C4) * inv[:, None]
    bf = (P["fuse"]["b"] - P["fuse"]["bn_m"]) * inv + P["fuse"]["bn_b"]
    _c = pallas_matmul(rows, wf.T, bf).reshape(N, Hh, Ww, E)           # NHWC

    x = conv_transpose2d_nhwc(_c, P["convd2x"]["w"], P["convd2x"]["b"])
    x = residual_block_nhwc(P["dense_2x"], x)
    x = conv_transpose2d_nhwc(x, P["convd1x"]["w"], P["convd1x"]["b"])
    x = residual_block_nhwc(P["dense_1x"], x)
    cp = conv2d_stride1_pallas(x, P["cp"]["w"], P["cp"]["b"], (1, 1, 1, 1))
    outputs.append(cp.transpose(0, 3, 1, 2))
    # output_softmax=False -> no sigmoid
    return outputs


# --------------------------------------------------------------------------- #
# Deterministic parameter initialization (shapes from DecoderTransformer.__init__)
# --------------------------------------------------------------------------- #
def _param_sampler(key):
    state = {"key": key}

    def nxt(shape, scale=0.05):
        state["key"], sub = jax.random.split(state["key"])
        return jax.random.normal(sub, shape, jnp.float32) * scale

    return nxt


def init_params(key, in_channels=(64, 128, 320, 512), embed_dim=256, output_nc=2):
    nxt = _param_sampler(key)
    P = {}
    P["cross"] = []
    for c in in_channels:
        P["cross"].append(dict(
            q1_w=nxt((c // 8, c, 1, 1)), q1_b=nxt((c // 8,)),
            k1_w=nxt((c // 4, c, 1, 1)), k1_b=nxt((c // 4,)),
            v1_w=nxt((c, c, 1, 1)), v1_b=nxt((c,)),
            q2_w=nxt((c // 8, c, 1, 1)), q2_b=nxt((c // 8,)),
            k2_w=nxt((c // 4, c, 1, 1)), k2_b=nxt((c // 4,)),
            v2_w=nxt((c, c, 1, 1)), v2_b=nxt((c,)),
            gamma=jnp.zeros((1,), jnp.float32),          # torch.zeros(1)
        ))
    P["mlp"] = [dict(w=nxt((embed_dim, c)), b=nxt((embed_dim,))) for c in in_channels]
    P["pred"] = []
    for _ in range(4):
        P["pred"].append(dict(
            c1_w=nxt((output_nc, embed_dim, 3, 3)), c1_b=nxt((output_nc,)),
            bn_w=jnp.ones((output_nc,), jnp.float32),
            bn_b=jnp.zeros((output_nc,), jnp.float32),
            bn_m=jnp.zeros((output_nc,), jnp.float32),
            bn_v=jnp.ones((output_nc,), jnp.float32),
            c2_w=nxt((output_nc, output_nc, 3, 3)), c2_b=nxt((output_nc,)),
        ))
    d = max(embed_dim // 8, 4)
    P["ceff"] = [dict(du_w=nxt((d, embed_dim, 1, 1)),
                      fc0_w=nxt((embed_dim, d, 1, 1)),
                      fc1_w=nxt((embed_dim, d, 1, 1))) for _ in range(4)]
    P["fuse"] = dict(w=nxt((embed_dim, embed_dim * 4, 1, 1)), b=nxt((embed_dim,)),
                     bn_w=jnp.ones((embed_dim,), jnp.float32),
                     bn_b=jnp.zeros((embed_dim,), jnp.float32),
                     bn_m=jnp.zeros((embed_dim,), jnp.float32),
                     bn_v=jnp.ones((embed_dim,), jnp.float32))
    P["convd2x"] = dict(w=nxt((embed_dim, embed_dim, 4, 4)), b=nxt((embed_dim,)))
    P["convd1x"] = dict(w=nxt((embed_dim, embed_dim, 4, 4)), b=nxt((embed_dim,)))
    P["dense_2x"] = dict(c1_w=nxt((embed_dim, embed_dim, 3, 3)), c1_b=nxt((embed_dim,)),
                         c2_w=nxt((embed_dim, embed_dim, 3, 3)), c2_b=nxt((embed_dim,)))
    P["dense_1x"] = dict(c1_w=nxt((embed_dim, embed_dim, 3, 3)), c1_b=nxt((embed_dim,)),
                         c2_w=nxt((embed_dim, embed_dim, 3, 3)), c2_b=nxt((embed_dim,)))
    P["cp"] = dict(w=nxt((output_nc, embed_dim, 3, 3)), b=nxt((output_nc,)))
    return P


# --------------------------------------------------------------------------- #
if __name__ == "__main__":
    key = jax.random.PRNGKey(0)
    kp, ka, kb = jax.random.split(key, 3)
    params = init_params(kp)

    N = 2
    shapes = [(N, 64, 16, 16), (N, 128, 8, 8), (N, 320, 4, 4), (N, 512, 2, 2)]
    keys_a = jax.random.split(ka, 4)
    keys_b = jax.random.split(kb, 4)
    x_1 = [jax.random.normal(keys_a[i], s, jnp.float32) for i, s in enumerate(shapes)]
    x_2 = [jax.random.normal(keys_b[i], s, jnp.float32) for i, s in enumerate(shapes)]

    outs = decoder_transformer_forward(params, x_1, x_2)
    outs = jax.block_until_ready(outs)

    # sanity: 5 prediction maps, last one at 4x the c1 resolution
    assert len(outs) == 5
    assert outs[0].shape == (N, 2, 2, 2)
    assert outs[1].shape == (N, 2, 4, 4)
    assert outs[2].shape == (N, 2, 8, 8)
    assert outs[3].shape == (N, 2, 16, 16)
    assert outs[4].shape == (N, 2, 64, 64)
    print("KERNEL_OK")
</pallas_src>

<mosaic_0001>
module attributes {stable_mosaic.version = 11 : i64} {
  func.func @_matmul_bias_kernel(%arg0: i32, %arg1: memref<512x64xbf16, #tpu.memory_space<vmem>>, %arg2: memref<64x128xbf16, #tpu.memory_space<vmem>>, %arg3: memref<1x128xf32, #tpu.memory_space<vmem>>, %arg4: memref<512x128xf32, #tpu.memory_space<vmem>>) attributes {dimension_semantics = [#tpu.dimension_semantics<parallel>], iteration_bounds = array<i64: 1>, scalar_prefetch = 0 : i64, scratch_operands = 0 : i64, tpu.core_type = #tpu.core_type<tc>, window_params = [{transform_indices = @transform_0, window_bounds = array<i64: 512, 64>}, {pipeline_mode = #tpu.pipeline_mode<synchronous>, transform_indices = @transform_1, window_bounds = array<i64: 64, 128>}, {pipeline_mode = #tpu.pipeline_mode<synchronous>, transform_indices = @transform_2, window_bounds = array<i64: 1, 128>}, {transform_indices = @transform_3, window_bounds = array<i64: 512, 128>}]} {
    %c0 = arith.constant 0 : index
    %c0_0 = arith.constant 0 : index
    %0 = vector.load %arg1[%c0, %c0_0] : memref<512x64xbf16, #tpu.memory_space<vmem>>, vector<512x64xbf16>
    %c0_1 = arith.constant 0 : index
    %c0_2 = arith.constant 0 : index
    %1 = vector.load %arg2[%c0_1, %c0_2] : memref<64x128xbf16, #tpu.memory_space<vmem>>, vector<64x128xbf16>
    %cst = arith.constant dense<0.000000e+00> : vector<512x128xf32>
    %2 = tpu.matmul %0, %1, %cst {dimension_numbers = #tpu.dot_dimension_numbers<[1], [0], [0], [1], [0, 0, 1, 1], [], []>} : vector<512x64xbf16>, vector<64x128xbf16>, vector<512x128xf32> -> vector<512x128xf32>
    %c0_3 = arith.constant 0 : index
    %c0_4 = arith.constant 0 : index
    %3 = vector.load %arg3[%c0_3, %c0_4] : memref<1x128xf32, #tpu.memory_space<vmem>>, vector<1x128xf32>
    %4 = vector.broadcast %3 : vector<1x128xf32> to vector<512x128xf32>
    %5 = arith.addf %2, %4 : vector<512x128xf32>
    %c0_5 = arith.constant 0 : index
    %c0_6 = arith.constant 0 : index
    %6 = vector.load %arg4[%c0_5, %c0_6] : memref<512x128xf32, #tpu.memory_space<vmem>>, vector<512x128xf32>
    tpu.vector_store %arg4[%c0_5, %c0_6], %5 {strides = array<i32>} : memref<512x128xf32, #tpu.memory_space<vmem>>, vector<512x128xf32>,
    return
  }
  func.func @transform_0(%arg0: i32) -> (i32, i32) {
    %c0_i32 = arith.constant 0 : i32
    %c0_i32_0 = arith.constant 0 : i32
    return %arg0, %c0_i32 : i32, i32
  }
  func.func @transform_1(%arg0: i32) -> (i32, i32) {
    %c0_i32 = arith.constant 0 : i32
    %c0_i32_0 = arith.constant 0 : i32
    %c0_i32_1 = arith.constant 0 : i32
    return %c0_i32, %c0_i32_0 : i32, i32
  }
  func.func @transform_2(%arg0: i32) -> (i32, i32) {
    %c0_i32 = arith.constant 0 : i32
    %c0_i32_0 = arith.constant 0 : i32
    %c0_i32_1 = arith.constant 0 : i32
    return %c0_i32, %c0_i32_0 : i32, i32
  }
  func.func @transform_3(%arg0: i32) -> (i32, i32) {
    %c0_i32 = arith.constant 0 : i32
    %c0_i32_0 = arith.constant 0 : i32
    return %arg0, %c0_i32 : i32, i32
  }
}

</mosaic_0001>

<llo_original>
// kernel: tpu_custom_call.1
$region0: #{tpu_custom_call.1}
  #allocation0 [shape = 'u32[]', space=smem, size = 0x4, offset = 0x4, fixed_abs, tag = 'smem constant byte address 0x4 - core index']
  #allocation1 [shape = 'u32[144,128]{1,0:T(1,128)}', space=vmem, size = 0x12000, scoped, tag = 'internal scratch']
  %s0 = inlined_call_operand.vmem [shape: bf16[512,64], index: 0, kind: input, shape index: {}]
  %s1 = inlined_call_operand.vmem [shape: bf16[64,128], index: 1, kind: input, shape index: {}]
  %s2 = inlined_call_operand.vmem [shape: f32[1,128], index: 2, kind: input, shape index: {}]
  %s3 = inlined_call_operand.hbm [shape: f32[512,128], index: 3, kind: output, shape index: {}]
  %s4 = sld [smem:[#allocation0]]
  $region22: #{tpu_custom_call.1} parent=0
    _
  %s6 = ssub.s32 1, %s4
  %s7 = scalar_select 0, %s6, %s4
  $region1: #{tpu_custom_call.1} parent=0
    #allocation2 [shape = 'u8[262144]{0}', space=vmem, size = 0x40000, scoped, tag = 'output window, operand 0, single buffered']
    #allocation3 [shape = 's32[1]{0}', space=sflag, size = 0x4, scoped, tag = 'scoped memory for tpu_custom_call.1']
    %8 = vsyncpa [#allocation3], 0
    // Predicated region
    $region2: #{tpu_custom_call.1} parent=1 // pred_check
      _
    $region3: #{tpu_custom_call.1} parent=1 // pred_check_branch
      %10 = sbr.rel (0) target = $region5
    $region4: #{tpu_custom_call.1} parent=1 // pred_region
      _
    $region5: #{tpu_custom_call.1} parent=1 // pred_fallthru
      _
    // Predicated region
    $region6: #{tpu_custom_call.1} parent=1 // pred_check
      _
    $region7: #{tpu_custom_call.1} parent=1 // pred_check_branch
      %12 = sbr.rel (0) target = $region9
    $region8: #{tpu_custom_call.1} parent=1 // pred_region
      _
    $region9: #{tpu_custom_call.1} parent=1 // pred_fallthru
      _
    // Predicated region
    $region10: #{tpu_custom_call.1} parent=1 // pred_check
      _
    $region11: #{tpu_custom_call.1} parent=1 // pred_check_branch
      %14 = sbr.rel (0) target = $region13
    $region12: #{tpu_custom_call.1} parent=1 // pred_region
      _
    $region13: #{tpu_custom_call.1} parent=1 // pred_fallthru
      _
    %v16 = vld [vmem:[%s0] sm:$0xf]
    %v17 = vld [vmem:[%s0 + $0x4] sm:$0xf]
    %v18 = vld [vmem:[%s0 + $0x8] sm:$0xf]
    %v19 = vld [vmem:[%s0 + $0xc] sm:$0xf]
    %v20 = vld [vmem:[%s0 + $0x10] sm:$0xf]
    %v21 = vld [vmem:[%s0 + $0x14] sm:$0xf]
    %v22 = vld [vmem:[%s0 + $0x18] sm:$0xf]
    %v23 = vld [vmem:[%s0 + $0x1c] sm:$0xf]
    %v24 = vld [vmem:[%s0 + $0x20] sm:$0xf]
    %v25 = vld [vmem:[%s0 + $0x24] sm:$0xf]
    %v26 = vld [vmem:[%s0 + $0x28] sm:$0xf]
    %v27 = vld [vmem:[%s0 + $0x2c] sm:$0xf]
    %v28 = vld [vmem:[%s0 + $0x30] sm:$0xf]
    %v29 = vld [vmem:[%s0 + $0x34] sm:$0xf]
    %v30 = vld [vmem:[%s0 + $0x38] sm:$0xf]
    %v31 = vld [vmem:[%s0 + $0x3c] sm:$0xf]
    %v32 = vld [vmem:[%s0 + $0x40] sm:$0xf]
    %v33 = vld [vmem:[%s0 + $0x44] sm:$0xf]
    %v34 = vld [vmem:[%s0 + $0x48] sm:$0xf]
    %v35 = vld [vmem:[%s0 + $0x4c] sm:$0xf]
    %v36 = vld [vmem:[%s0 + $0x50] sm:$0xf]
    %v37 = vld [vmem:[%s0 + $0x54] sm:$0xf]
    %v38 = vld [vmem:[%s0 + $0x58] sm:$0xf]
    %v39 = vld [vmem:[%s0 + $0x5c] sm:$0xf]
    %v40 = vld [vmem:[%s0 + $0x60] sm:$0xf]
    %v41 = vld [vmem:[%s0 + $0x64] sm:$0xf]
    %v42 = vld [vmem:[%s0 + $0x68] sm:$0xf]
    %v43 = vld [vmem:[%s0 + $0x6c] sm:$0xf]
    %v44 = vld [vmem:[%s0 + $0x70] sm:$0xf]
    %v45 = vld [vmem:[%s0 + $0x74] sm:$0xf]
    %v46 = vld [vmem:[%s0 + $0x78] sm:$0xf]
    %v47 = vld [vmem:[%s0 + $0x7c] sm:$0xf]
    %v48 = vld [vmem:[%s0 + $0x80] sm:$0xf]
    %v49 = vld [vmem:[%s0 + $0x84] sm:$0xf]
    %v50 = vld [vmem:[%s0 + $0x88] sm:$0xf]
    %v51 = vld [vmem:[%s0 + $0x8c] sm:$0xf]
    %v52 = vld [vmem:[%s0 + $0x90] sm:$0xf]
    %v53 = vld [vmem:[%s0 + $0x94] sm:$0xf]
    %v54 = vld [vmem:[%s0 + $0x98] sm:$0xf]
    %v55 = vld [vmem:[%s0 + $0x9c] sm:$0xf]
    %v56 = vld [vmem:[%s0 + $0xa0] sm:$0xf]
    %v57 = vld [vmem:[%s0 + $0xa4] sm:$0xf]
    %v58 = vld [vmem:[%s0 + $0xa8] sm:$0xf]
    %v59 = vld [vmem:[%s0 + $0xac] sm:$0xf]
    %v60 = vld [vmem:[%s0 + $0xb0] sm:$0xf]
    %v61 = vld [vmem:[%s0 + $0xb4] sm:$0xf]
    %v62 = vld [vmem:[%s0 + $0xb8] sm:$0xf]
    %v63 = vld [vmem:[%s0 + $0xbc] sm:$0xf]
    %v64 = vld [vmem:[%s0 + $0xc0] sm:$0xf]
    %v65 = vld [vmem:[%s0 + $0xc4] sm:$0xf]
    %v66 = vld [vmem:[%s0 + $0xc8] sm:$0xf]
    %v67 = vld [vmem:[%s0 + $0xcc] sm:$0xf]
    %v68 = vld [vmem:[%s0 + $0xd0] sm:$0xf]
    %v69 = vld [vmem:[%s0 + $0xd4] sm:$0xf]
    %v70 = vld [vmem:[%s0 + $0xd8] sm:$0xf]
    %v71 = vld [vmem:[%s0 + $0xdc] sm:$0xf]
    %v72 = vld [vmem:[%s0 + $0xe0] sm:$0xf]
    %v73 = vld [vmem:[%s0 + $0xe4] sm:$0xf]
    %v74 = vld [vmem:[%s0 + $0xe8] sm:$0xf]
    %v75 = vld [vmem:[%s0 + $0xec] sm:$0xf]
    %v76 = vld [vmem:[%s0 + $0xf0] sm:$0xf]
    %v77 = vld [vmem:[%s0 + $0xf4] sm:$0xf]
    %v78 = vld [vmem:[%s0 + $0xf8] sm:$0xf]
    %v79 = vld [vmem:[%s0 + $0xfc] sm:$0xf]
    %v80 = vld [vmem:[%s1] sm:$0xf]
    %v81 = vld [vmem:[%s1 + $0x4] sm:$0xf]
    %v82 = vld [vmem:[%s1 + $0x8] sm:$0xf]
    %v83 = vld [vmem:[%s1 + $0xc] sm:$0xf]
    %v84 = vld [vmem:[%s1 + $0x10] sm:$0xf]
    %v85 = vld [vmem:[%s1 + $0x14] sm:$0xf]
    %v86 = vld [vmem:[%s1 + $0x18] sm:$0xf]
    %v87 = vld [vmem:[%s1 + $0x1c] sm:$0xf]
    %v88 = vld [vmem:[%s2] sm:$0x1]
    %v90 = vlaneseq
    %v91 = vshrl.u32 %v90, 7
    %v92 = vsub.s32 0, %v91
    %v93 = vrot.slane %v88, %v92
    %v159 = vunpack.c.l.b16 %v16
    %v160 = vunpack.c.l.b16 %v17
    %v161 = vunpack.c.l.b16 %v18
    %v162 = vunpack.c.l.b16 %v19
    %v163 = vunpack.c.l.b16 %v20
    %v164 = vunpack.c.l.b16 %v21
    %v165 = vunpack.c.l.b16 %v22
    %v166 = vunpack.c.l.b16 %v23
    %v167 = vunpack.c.l.b16 %v24
    %v168 = vunpack.c.l.b16 %v25
    %v169 = vunpack.c.l.b16 %v26
    %v170 = vunpack.c.l.b16 %v27
    %v171 = vunpack.c.l.b16 %v28
    %v172 = vunpack.c.l.b16 %v29
    %v173 = vunpack.c.l.b16 %v30
    %v174 = vunpack.c.l.b16 %v31
    %v175 = vunpack.c.l.b16 %v32
    %v176 = vunpack.c.l.b16 %v33
    %v177 = vunpack.c.l.b16 %v34
    %v178 = vunpack.c.l.b16 %v35
    %v179 = vunpack.c.l.b16 %v36
    %v180 = vunpack.c.l.b16 %v37
    %v181 = vunpack.c.l.b16 %v38
    %v182 = vunpack.c.l.b16 %v39
    %v183 = vunpack.c.l.b16 %v40
    %v184 = vunpack.c.l.b16 %v41
    %v185 = vunpack.c.l.b16 %v42
    %v186 = vunpack.c.l.b16 %v43
    %v187 = vunpack.c.l.b16 %v44
    %v188 = vunpack.c.l.b16 %v45
    %v189 = vunpack.c.l.b16 %v46
    %v190 = vunpack.c.l.b16 %v47
    %v191 = vunpack.c.l.b16 %v48
    %v192 = vunpack.c.l.b16 %v49
    %v193 = vunpack.c.l.b16 %v50
    %v194 = vunpack.c.l.b16 %v51
    %v195 = vunpack.c.l.b16 %v52
    %v196 = vunpack.c.l.b16 %v53
    %v197 = vunpack.c.l.b16 %v54
    %v198 = vunpack.c.l.b16 %v55
    %v199 = vunpack.c.l.b16 %v56
    %v200 = vunpack.c.l.b16 %v57
    %v201 = vunpack.c.l.b16 %v58
    %v202 = vunpack.c.l.b16 %v59
    %v203 = vunpack.c.l.b16 %v60
    %v204 = vunpack.c.l.b16 %v61
    %v205 = vunpack.c.l.b16 %v62
    %v206 = vunpack.c.l.b16 %v63
    %v207 = vunpack.c.l.b16 %v64
    %v208 = vunpack.c.l.b16 %v65
    %v209 = vunpack.c.l.b16 %v66
    %v210 = vunpack.c.l.b16 %v67
    %v211 = vunpack.c.l.b16 %v68
    %v212 = vunpack.c.l.b16 %v69
    %v213 = vunpack.c.l.b16 %v70
    %v214 = vunpack.c.l.b16 %v71
    %v215 = vunpack.c.l.b16 %v72
    %v216 = vunpack.c.l.b16 %v73
    %v217 = vunpack.c.l.b16 %v74
    %v218 = vunpack.c.l.b16 %v75
    %v219 = vunpack.c.l.b16 %v76
    %v220 = vunpack.c.l.b16 %v77
    %v221 = vunpack.c.l.b16 %v78
    %v222 = vunpack.c.l.b16 %v79
    %v223 = vpack.c.b16 %v160, %v159
    %v224 = vpack.c.b16 %v162, %v161
    %v225 = vpack.c.b16 %v164, %v163
    %v226 = vpack.c.b16 %v166, %v165
    %v227 = vpack.c.b16 %v168, %v167
    %v228 = vpack.c.b16 %v170, %v169
    %v229 = vpack.c.b16 %v172, %v171
    %v230 = vpack.c.b16 %v174, %v173
    %v231 = vpack.c.b16 %v176, %v175
    %v232 = vpack.c.b16 %v178, %v177
    %v233 = vpack.c.b16 %v180, %v179
    %v234 = vpack.c.b16 %v182, %v181
    %v235 = vpack.c.b16 %v184, %v183
    %v236 = vpack.c.b16 %v186, %v185
    %v237 = vpack.c.b16 %v188, %v187
    %v238 = vpack.c.b16 %v190, %v189
    %v239 = vpack.c.b16 %v192, %v191
    %v240 = vpack.c.b16 %v194, %v193
    %v241 = vpack.c.b16 %v196, %v195
    %v242 = vpack.c.b16 %v198, %v197
    %v243 = vpack.c.b16 %v200, %v199
    %v244 = vpack.c.b16 %v202, %v201
    %v245 = vpack.c.b16 %v204, %v203
    %v246 = vpack.c.b16 %v206, %v205
    %v247 = vpack.c.b16 %v208, %v207
    %v248 = vpack.c.b16 %v210, %v209
    %v249 = vpack.c.b16 %v212, %v211
    %v250 = vpack.c.b16 %v214, %v213
    %v251 = vpack.c.b16 %v216, %v215
    %v252 = vpack.c.b16 %v218, %v217
    %v253 = vpack.c.b16 %v220, %v219
    %v254 = vpack.c.b16 %v222, %v221
    %v263 = vunpack.c.l.b16 %v80
    %v264 = vunpack.c.l.b16 %v81
    %v265 = vunpack.c.l.b16 %v82
    %v266 = vunpack.c.l.b16 %v83
    %v267 = vunpack.c.l.b16 %v84
    %v268 = vunpack.c.l.b16 %v85
    %v269 = vunpack.c.l.b16 %v86
    %v270 = vunpack.c.l.b16 %v87
    %v271 = vpack.c.b16 %v264, %v263
    %v272 = vpack.c.b16 %v266, %v265
    %v273 = vpack.c.b16 %v268, %v267
    %v274 = vpack.c.b16 %v270, %v269
    %vm279 = vcmask 523264
    %v281 = vsel %vm279, %v223, 0
    %v284 = vsel %vm279, %v224, 0
    %v287 = vsel %vm279, %v225, 0
    %v290 = vsel %vm279, %v226, 0
    %v293 = vsel %vm279, %v227, 0
    %v296 = vsel %vm279, %v228, 0
    %v299 = vsel %vm279, %v229, 0
    %v302 = vsel %vm279, %v230, 0
    %v305 = vsel %vm279, %v231, 0
    %v308 = vsel %vm279, %v232, 0
    %v311 = vsel %vm279, %v233, 0
    %v314 = vsel %vm279, %v234, 0
    %v317 = vsel %vm279, %v235, 0
    %v320 = vsel %vm279, %v236, 0
    %v323 = vsel %vm279, %v237, 0
    %v326 = vsel %vm279, %v238, 0
    %v329 = vsel %vm279, %v239, 0
    %v332 = vsel %vm279, %v240, 0
    %v335 = vsel %vm279, %v241, 0
    %v338 = vsel %vm279, %v242, 0
    %v341 = vsel %vm279, %v243, 0
    %v344 = vsel %vm279, %v244, 0
    %v347 = vsel %vm279, %v245, 0
    %v350 = vsel %vm279, %v246, 0
    %v353 = vsel %vm279, %v247, 0
    %v356 = vsel %vm279, %v248, 0
    %v359 = vsel %vm279, %v249, 0
    %v362 = vsel %vm279, %v250, 0
    %v365 = vsel %vm279, %v251, 0
    %v368 = vsel %vm279, %v252, 0
    %v371 = vsel %vm279, %v253, 0
    %v374 = vsel %vm279, %v254, 0
    %376 = vmatprep.subr.bf16.mxu0 0
    %377 = vmatpush1.bf16.msra.mxu0 0
    %378 = vmatprep.subr.bf16.mxu0 0
    %379 = vmatpush1.bf16.msra.mxu0 0
    %380 = vmatprep.subr.bf16.mxu0 0
    %381 = vmatpush1.bf16.msra.mxu0 0
    %382 = vmatprep.subr.bf16.mxu0 0
    %383 = vmatpush1.bf16.msra.mxu0 0
    %384 = vmatprep.subr.bf16.mxu0 0
    %385 = vmatpush1.bf16.msra.mxu0 %v274
    %386 = vmatprep.subr.bf16.mxu0 0
    %387 = vmatpush1.bf16.msra.mxu0 %v273
    %388 = vmatprep.subr.bf16.mxu0 0
    %389 = vmatpush1.bf16.msra.mxu0 %v272
    %390 = vmatprep.subr.bf16.mxu0 0
    %391 = vmatpush1.bf16.msra.mxu0 %v271
    %392 = vmatprep.subr.bf16.mxu0 0
    %393 = vmatpush2.bf16.msra.mxu0 0
    %394 = vmatprep.subr.bf16.mxu0 0
    %395 = vmatpush2.bf16.msra.mxu0 0
    %396 = vmatprep.subr.bf16.mxu0 0
    %397 = vmatpush2.bf16.msra.mxu0 0
    %398 = vmatprep.subr.bf16.mxu0 0
    %399 = vmatpush2.bf16.msra.mxu0 0
    %400 = vmatprep.subr.bf16.mxu0 0
    %401 = vmatpush2.bf16.msra.mxu0 0
    %402 = vmatprep.subr.bf16.mxu0 0
    %403 = vmatpush2.bf16.msra.mxu0 0
    %404 = vmatprep.subr.bf16.mxu0 0
    %405 = vmatpush2.bf16.msra.mxu0 0
    %406 = vmatprep.subr.bf16.mxu0 0
    %407 = vmatpush2.bf16.msra.mxu0 0
    %408 = vmatprep.mubr.bf16.mxu0 0
    %409 = vmatmul.mubr.bf16.gmra.mxu0 %v281
    %v410 = vpop.f32.mrf.mxu0
    %v411 = vadd.f32 %v93, %v410
    %v412 = vpop.f32.mrf.mxu0
    %v413 = vpop.f32.mrf.mxu0
    %v414 = vadd.f32 %v93, %v413
    %v415 = vpop.f32.mrf.mxu0
    %416 = vmatprep.mubr.bf16.mxu0 0
    %417 = vmatmul.mubr.bf16.gmra.mxu0 %v284
    %v418 = vpop.f32.mrf.mxu0
    %v419 = vadd.f32 %v93, %v418
    %v420 = vpop.f32.mrf.mxu0
    %v421 = vpop.f32.mrf.mxu0
    %v422 = vadd.f32 %v93, %v421
    %v423 = vpop.f32.mrf.mxu0
    %424 = vmatprep.mubr.bf16.mxu0 0
    %425 = vmatmul.mubr.bf16.gmra.mxu0 %v287
    %v426 = vpop.f32.mrf.mxu0
    %v427 = vadd.f32 %v93, %v426
    %v428 = vpop.f32.mrf.mxu0
    %v429 = vpop.f32.mrf.mxu0
    %v430 = vadd.f32 %v93, %v429
    %v431 = vpop.f32.mrf.mxu0
    %432 = vmatprep.mubr.bf16.mxu0 0
    %433 = vmatmul.mubr.bf16.gmra.mxu0 %v290
    %v434 = vpop.f32.mrf.mxu0
    %v435 = vadd.f32 %v93, %v434
    %v436 = vpop.f32.mrf.mxu0
    %v437 = vpop.f32.mrf.mxu0
    %v438 = vadd.f32 %v93, %v437
    %v439 = vpop.f32.mrf.mxu0
    %440 = vmatprep.mubr.bf16.mxu0 0
    %441 = vmatmul.mubr.bf16.gmra.mxu0 %v293
    %v442 = vpop.f32.mrf.mxu0
    %v443 = vadd.f32 %v93, %v442
    %v444 = vpop.f32.mrf.mxu0
    %v445 = vpop.f32.mrf.mxu0
    %v446 = vadd.f32 %v93, %v445
    %v447 = vpop.f32.mrf.mxu0
    %448 = vmatprep.mubr.bf16.mxu0 0
    %449 = vmatmul.mubr.bf16.gmra.mxu0 %v296
    %v450 = vpop.f32.mrf.mxu0
    %v451 = vadd.f32 %v93, %v450
    %v452 = vpop.f32.mrf.mxu0
    %v453 = vpop.f32.mrf.mxu0
    %v454 = vadd.f32 %v93, %v453
    %v455 = vpop.f32.mrf.mxu0
    %456 = vmatprep.mubr.bf16.mxu0 0
    %457 = vmatmul.mubr.bf16.gmra.mxu0 %v299
    %v458 = vpop.f32.mrf.mxu0
    %v459 = vadd.f32 %v93, %v458
    %v460 = vpop.f32.mrf.mxu0
    %v461 = vpop.f32.mrf.mxu0
    %v462 = vadd.f32 %v93, %v461
    %v463 = vpop.f32.mrf.mxu0
    %464 = vmatprep.mubr.bf16.mxu0 0
    %465 = vmatmul.mubr.bf16.gmra.mxu0 %v302
    %v466 = vpop.f32.mrf.mxu0
    %v467 = vadd.f32 %v93, %v466
    %v468 = vpop.f32.mrf.mxu0
    %v469 = vpop.f32.mrf.mxu0
    %v470 = vadd.f32 %v93, %v469
    %v471 = vpop.f32.mrf.mxu0
    %472 = vmatprep.mubr.bf16.mxu0 0
    %473 = vmatmul.mubr.bf16.gmra.mxu0 %v305
    %v474 = vpop.f32.mrf.mxu0
    %v475 = vadd.f32 %v93, %v474
    %v476 = vpop.f32.mrf.mxu0
    %v477 = vpop.f32.mrf.mxu0
    %v478 = vadd.f32 %v93, %v477
    %v479 = vpop.f32.mrf.mxu0
    %480 = vmatprep.mubr.bf16.mxu0 0
    %481 = vmatmul.mubr.bf16.gmra.mxu0 %v308
    %v482 = vpop.f32.mrf.mxu0
    %v483 = vadd.f32 %v93, %v482
    %v484 = vpop.f32.mrf.mxu0
    %v485 = vpop.f32.mrf.mxu0
    %v486 = vadd.f32 %v93, %v485
    %v487 = vpop.f32.mrf.mxu0
    %488 = vmatprep.mubr.bf16.mxu0 0
    %489 = vmatmul.mubr.bf16.gmra.mxu0 %v311
    %v490 = vpop.f32.mrf.mxu0
    %v491 = vadd.f32 %v93, %v490
    %v492 = vpop.f32.mrf.mxu0
    %v493 = vpop.f32.mrf.mxu0
    %v494 = vadd.f32 %v93, %v493
    %v495 = vpop.f32.mrf.mxu0
    %496 = vmatprep.mubr.bf16.mxu0 0
    %497 = vmatmul.mubr.bf16.gmra.mxu0 %v314
    %v498 = vpop.f32.mrf.mxu0
    %v499 = vadd.f32 %v93, %v498
    %v500 = vpop.f32.mrf.mxu0
    %v501 = vpop.f32.mrf.mxu0
    %v502 = vadd.f32 %v93, %v501
    %v503 = vpop.f32.mrf.mxu0
    %504 = vmatprep.mubr.bf16.mxu0 0
    %505 = vmatmul.mubr.bf16.gmra.mxu0 %v317
    %v506 = vpop.f32.mrf.mxu0
    %v507 = vadd.f32 %v93, %v506
    %v508 = vpop.f32.mrf.mxu0
    %v509 = vpop.f32.mrf.mxu0
    %v510 = vadd.f32 %v93, %v509
    %v511 = vpop.f32.mrf.mxu0
    %512 = vmatprep.mubr.bf16.mxu0 0
    %513 = vmatmul.mubr.bf16.gmra.mxu0 %v320
    %v514 = vpop.f32.mrf.mxu0
    %v515 = vadd.f32 %v93, %v514
    %v516 = vpop.f32.mrf.mxu0
    %v517 = vpop.f32.mrf.mxu0
    %v518 = vadd.f32 %v93, %v517
    %v519 = vpop.f32.mrf.mxu0
    %520 = vmatprep.mubr.bf16.mxu0 0
    %521 = vmatmul.mubr.bf16.gmra.mxu0 %v323
    %v522 = vpop.f32.mrf.mxu0
    %v523 = vadd.f32 %v93, %v522
    %v524 = vpop.f32.mrf.mxu0
    %v525 = vpop.f32.mrf.mxu0
    %v526 = vadd.f32 %v93, %v525
    %v527 = vpop.f32.mrf.mxu0
    %528 = vmatprep.mubr.bf16.mxu0 0
    %529 = vmatmul.mubr.bf16.gmra.mxu0 %v326
    %v530 = vpop.f32.mrf.mxu0
    %v531 = vadd.f32 %v93, %v530
    %v532 = vpop.f32.mrf.mxu0
    %v533 = vpop.f32.mrf.mxu0
    %v534 = vadd.f32 %v93, %v533
    %v535 = vpop.f32.mrf.mxu0
    %536 = vmatprep.mubr.bf16.mxu0 0
    %537 = vmatmul.mubr.bf16.gmra.mxu0 %v329
    %v538 = vpop.f32.mrf.mxu0
    %v539 = vadd.f32 %v93, %v538
    %v540 = vpop.f32.mrf.mxu0
    %v541 = vpop.f32.mrf.mxu0
    %v542 = vadd.f32 %v93, %v541
    %v543 = vpop.f32.mrf.mxu0
    %544 = vmatprep.mubr.bf16.mxu0 0
    %545 = vmatmul.mubr.bf16.gmra.mxu0 %v332
    %v546 = vpop.f32.mrf.mxu0
    %v547 = vadd.f32 %v93, %v546
    %v548 = vpop.f32.mrf.mxu0
    %v549 = vpop.f32.mrf.mxu0
    %v550 = vadd.f32 %v93, %v549
    %v551 = vpop.f32.mrf.mxu0
    %552 = vmatprep.mubr.bf16.mxu0 0
    %553 = vmatmul.mubr.bf16.gmra.mxu0 %v335
    %v554 = vpop.f32.mrf.mxu0
    %v555 = vadd.f32 %v93, %v554
    %v556 = vpop.f32.mrf.mxu0
    %v557 = vpop.f32.mrf.mxu0
    %v558 = vadd.f32 %v93, %v557
    %v559 = vpop.f32.mrf.mxu0
    %560 = vmatprep.mubr.bf16.mxu0 0
    %561 = vmatmul.mubr.bf16.gmra.mxu0 %v338
    %v562 = vpop.f32.mrf.mxu0
    %v563 = vadd.f32 %v93, %v562
    %v564 = vpop.f32.mrf.mxu0
    %v565 = vpop.f32.mrf.mxu0
    %v566 = vadd.f32 %v93, %v565
    %v567 = vpop.f32.mrf.mxu0
    %568 = vmatprep.mubr.bf16.mxu0 0
    %569 = vmatmul.mubr.bf16.gmra.mxu0 %v341
    %v570 = vpop.f32.mrf.mxu0
    %v571 = vadd.f32 %v93, %v570
    %v572 = vpop.f32.mrf.mxu0
    %v573 = vpop.f32.mrf.mxu0
    %v574 = vadd.f32 %v93, %v573
    %v575 = vpop.f32.mrf.mxu0
    %576 = vmatprep.mubr.bf16.mxu0 0
    %577 = vmatmul.mubr.bf16.gmra.mxu0 %v344
    %v578 = vpop.f32.mrf.mxu0
    %v579 = vadd.f32 %v93, %v578
    %v580 = vpop.f32.mrf.mxu0
    %v581 = vpop.f32.mrf.mxu0
    %v582 = vadd.f32 %v93, %v581
    %v583 = vpop.f32.mrf.mxu0
    %584 = vmatprep.mubr.bf16.mxu0 0
    %585 = vmatmul.mubr.bf16.gmra.mxu0 %v347
    %v586 = vpop.f32.mrf.mxu0
    %v587 = vadd.f32 %v93, %v586
    %v588 = vpop.f32.mrf.mxu0
    %v589 = vpop.f32.mrf.mxu0
    %v590 = vadd.f32 %v93, %v589
    %v591 = vpop.f32.mrf.mxu0
    %592 = vmatprep.mubr.bf16.mxu0 0
    %593 = vmatmul.mubr.bf16.gmra.mxu0 %v350
    %v594 = vpop.f32.mrf.mxu0
    %v595 = vadd.f32 %v93, %v594
    %v596 = vpop.f32.mrf.mxu0
    %v597 = vpop.f32.mrf.mxu0
    %v598 = vadd.f32 %v93, %v597
    %v599 = vpop.f32.mrf.mxu0
    %600 = vmatprep.mubr.bf16.mxu0 0
    %601 = vmatmul.mubr.bf16.gmra.mxu0 %v353
    %v602 = vpop.f32.mrf.mxu0
    %v603 = vadd.f32 %v93, %v602
    %v604 = vpop.f32.mrf.mxu0
    %v605 = vpop.f32.mrf.mxu0
    %v606 = vadd.f32 %v93, %v605
    %v607 = vpop.f32.mrf.mxu0
    %608 = vmatprep.mubr.bf16.mxu0 0
    %609 = vmatmul.mubr.bf16.gmra.mxu0 %v356
    %v610 = vpop.f32.mrf.mxu0
    %v611 = vadd.f32 %v93, %v610
    %v612 = vpop.f32.mrf.mxu0
    %v613 = vpop.f32.mrf.mxu0
    %v614 = vadd.f32 %v93, %v613
    %v615 = vpop.f32.mrf.mxu0
    %616 = vmatprep.mubr.bf16.mxu0 0
    %617 = vmatmul.mubr.bf16.gmra.mxu0 %v359
    %v618 = vpop.f32.mrf.mxu0
    %v619 = vadd.f32 %v93, %v618
    %v620 = vpop.f32.mrf.mxu0
    %v621 = vpop.f32.mrf.mxu0
    %v622 = vadd.f32 %v93, %v621
    %v623 = vpop.f32.mrf.mxu0
    %624 = vmatprep.mubr.bf16.mxu0 0
    %625 = vmatmul.mubr.bf16.gmra.mxu0 %v362
    %v626 = vpop.f32.mrf.mxu0
    %v627 = vadd.f32 %v93, %v626
    %v628 = vpop.f32.mrf.mxu0
    %v629 = vpop.f32.mrf.mxu0
    %v630 = vadd.f32 %v93, %v629
    %v631 = vpop.f32.mrf.mxu0
    %632 = vmatprep.mubr.bf16.mxu0 0
    %633 = vmatmul.mubr.bf16.gmra.mxu0 %v365
    %v634 = vpop.f32.mrf.mxu0
    %v635 = vadd.f32 %v93, %v634
    %v636 = vpop.f32.mrf.mxu0
    %v637 = vpop.f32.mrf.mxu0
    %v638 = vadd.f32 %v93, %v637
    %v639 = vpop.f32.mrf.mxu0
    %640 = vmatprep.mubr.bf16.mxu0 0
    %641 = vmatmul.mubr.bf16.gmra.mxu0 %v368
    %v642 = vpop.f32.mrf.mxu0
    %v643 = vadd.f32 %v93, %v642
    %v644 = vpop.f32.mrf.mxu0
    %v645 = vpop.f32.mrf.mxu0
    %v646 = vadd.f32 %v93, %v645
    %v647 = vpop.f32.mrf.mxu0
    %648 = vmatprep.mubr.bf16.mxu0 0
    %649 = vmatmul.mubr.bf16.gmra.mxu0 %v371
    %v650 = vpop.f32.mrf.mxu0
    %v651 = vadd.f32 %v93, %v650
    %v652 = vpop.f32.mrf.mxu0
    %v653 = vpop.f32.mrf.mxu0
    %v654 = vadd.f32 %v93, %v653
    %v655 = vpop.f32.mrf.mxu0
    %656 = vmatprep.mubr.bf16.mxu0 0
    %657 = vmatmul.mubr.bf16.gmra.mxu0 %v374
    %v658 = vpop.f32.mrf.mxu0
    %v659 = vadd.f32 %v93, %v658
    %v660 = vpop.f32.mrf.mxu0
    %v661 = vpop.f32.mrf.mxu0
    %v662 = vadd.f32 %v93, %v661
    %v663 = vpop.f32.mrf.mxu0
    %664 = vdwg.mxu0
    %665 = vst [vmem:[#allocation2] sm:$0xff] %v411
    %666 = vst [vmem:[#allocation2 + $0x8] sm:$0xff] %v414
    %667 = vst [vmem:[#allocation2 + $0x10] sm:$0xff] %v419
    %668 = vst [vmem:[#allocation2 + $0x18] sm:$0xff] %v422
    %669 = vst [vmem:[#allocation2 + $0x20] sm:$0xff] %v427
    %670 = vst [vmem:[#allocation2 + $0x28] sm:$0xff] %v430
    %671 = vst [vmem:[#allocation2 + $0x30] sm:$0xff] %v435
    %672 = vst [vmem:[#allocation2 + $0x38] sm:$0xff] %v438
    %673 = vst [vmem:[#allocation2 + $0x40] sm:$0xff] %v443
    %674 = vst [vmem:[#allocation2 + $0x48] sm:$0xff] %v446
    %675 = vst [vmem:[#allocation2 + $0x50] sm:$0xff] %v451
    %676 = vst [vmem:[#allocation2 + $0x58] sm:$0xff] %v454
    %677 = vst [vmem:[#allocation2 + $0x60] sm:$0xff] %v459
    %678 = vst [vmem:[#allocation2 + $0x68] sm:$0xff] %v462
    %679 = vst [vmem:[#allocation2 + $0x70] sm:$0xff] %v467
    %680 = vst [vmem:[#allocation2 + $0x78] sm:$0xff] %v470
    %681 = vst [vmem:[#allocation2 + $0x80] sm:$0xff] %v475
    %682 = vst [vmem:[#allocation2 + $0x88] sm:$0xff] %v478
    %683 = vst [vmem:[#allocation2 + $0x90] sm:$0xff] %v483
    %684 = vst [vmem:[#allocation2 + $0x98] sm:$0xff] %v486
    %685 = vst [vmem:[#allocation2 + $0xa0] sm:$0xff] %v491
    %686 = vst [vmem:[#allocation2 + $0xa8] sm:$0xff] %v494
    %687 = vst [vmem:[#allocation2 + $0xb0] sm:$0xff] %v499
    %688 = vst [vmem:[#allocation2 + $0xb8] sm:$0xff] %v502
    %689 = vst [vmem:[#allocation2 + $0xc0] sm:$0xff] %v507
    %690 = vst [vmem:[#allocation2 + $0xc8] sm:$0xff] %v510
    %691 = vst [vmem:[#allocation2 + $0xd0] sm:$0xff] %v515
    %692 = vst [vmem:[#allocation2 + $0xd8] sm:$0xff] %v518
    %693 = vst [vmem:[#allocation2 + $0xe0] sm:$0xff] %v523
    %694 = vst [vmem:[#allocation2 + $0xe8] sm:$0xff] %v526
    %695 = vst [vmem:[#allocation2 + $0xf0] sm:$0xff] %v531
    %696 = vst [vmem:[#allocation2 + $0xf8] sm:$0xff] %v534
    %697 = vst [vmem:[#allocation2 + $0x100] sm:$0xff] %v539
    %698 = vst [vmem:[#allocation2 + $0x108] sm:$0xff] %v542
    %699 = vst [vmem:[#allocation2 + $0x110] sm:$0xff] %v547
    %700 = vst [vmem:[#allocation2 + $0x118] sm:$0xff] %v550
    %701 = vst [vmem:[#allocation2 + $0x120] sm:$0xff] %v555
    %702 = vst [vmem:[#allocation2 + $0x128] sm:$0xff] %v558
    %703 = vst [vmem:[#allocation2 + $0x130] sm:$0xff] %v563
    %704 = vst [vmem:[#allocation2 + $0x138] sm:$0xff] %v566
    %705 = vst [vmem:[#allocation2 + $0x140] sm:$0xff] %v571
    %706 = vst [vmem:[#allocation2 + $0x148] sm:$0xff] %v574
    %707 = vst [vmem:[#allocation2 + $0x150] sm:$0xff] %v579
    %708 = vst [vmem:[#allocation2 + $0x158] sm:$0xff] %v582
    %709 = vst [vmem:[#allocation2 + $0x160] sm:$0xff] %v587
    %710 = vst [vmem:[#allocation2 + $0x168] sm:$0xff] %v590
    %711 = vst [vmem:[#allocation2 + $0x170] sm:$0xff] %v595
    %712 = vst [vmem:[#allocation2 + $0x178] sm:$0xff] %v598
    %713 = vst [vmem:[#allocation2 + $0x180] sm:$0xff] %v603
    %714 = vst [vmem:[#allocation2 + $0x188] sm:$0xff] %v606
    %715 = vst [vmem:[#allocation2 + $0x190] sm:$0xff] %v611
    %716 = vst [vmem:[#allocation2 + $0x198] sm:$0xff] %v614
    %717 = vst [vmem:[#allocation2 + $0x1a0] sm:$0xff] %v619
    %718 = vst [vmem:[#allocation2 + $0x1a8] sm:$0xff] %v622
    %719 = vst [vmem:[#allocation2 + $0x1b0] sm:$0xff] %v627
    %720 = vst [vmem:[#allocation2 + $0x1b8] sm:$0xff] %v630
    %721 = vst [vmem:[#allocation2 + $0x1c0] sm:$0xff] %v635
    %722 = vst [vmem:[#allocation2 + $0x1c8] sm:$0xff] %v638
    %723 = vst [vmem:[#allocation2 + $0x1d0] sm:$0xff] %v643
    %724 = vst [vmem:[#allocation2 + $0x1d8] sm:$0xff] %v646
    %725 = vst [vmem:[#allocation2 + $0x1e0] sm:$0xff] %v651
    %726 = vst [vmem:[#allocation2 + $0x1e8] sm:$0xff] %v654
    %727 = vst [vmem:[#allocation2 + $0x1f0] sm:$0xff] %v659
    %728 = vst [vmem:[#allocation2 + $0x1f8] sm:$0xff] %v662
    // Predicated region
    $region14: #{tpu_custom_call.1} parent=1 // pred_check
      _
    $region15: #{tpu_custom_call.1} parent=1 // pred_check_branch
      %730 = sbr.rel (0) target = $region17
    $region16: #{tpu_custom_call.1} parent=1 // pred_region
      %s732 = ssub.s32 8192, 8192
      %733 = vsyncadd [#allocation3], %s732
      %s734 = sshll.u32 [#allocation2], 4
      %s735 = int_to_ptr.vmem [resolvable:$true] %s734
      %740 = dma.vmem_to_hbm [thread:$0]  %s735, 8192, %s3, [#allocation3], 128, 128, 8
    $region17: #{tpu_custom_call.1} parent=1 // pred_fallthru
      _
    // Predicated region
    $region18: #{tpu_custom_call.1} parent=1 // pred_check
      _
    $region19: #{tpu_custom_call.1} parent=1 // pred_check_branch
      %742 = sbr.rel (0) target = $region21
    $region20: #{tpu_custom_call.1} parent=1 // pred_region
      %743 = dma.done [#allocation3], 8192
    $region21: #{tpu_custom_call.1} parent=1 // pred_fallthru
      _
    %744 = vsyncpa [#allocation3], 1

</llo_original>
